<compile_context>
chip_gen: v7x
topology: tpu7x:2x2x1
jax: 0.10.0
libtpu: 0.0.40
codegen_flags: <defaults>
</compile_context>

<pallas_src>
import functools

import jax
import jax.numpy as jnp
from jax import lax
from jax.experimental import pallas as pl
from jax.experimental.pallas import tpu as pltpu

LN_EPS = 1e-5  # PyTorch nn.LayerNorm default


# ----------------------------- kernel helpers ------------------------------ #

def _layernorm(x, gamma, beta):
    mu = jnp.mean(x, axis=-1, keepdims=True)
    var = jnp.mean(jnp.square(x - mu), axis=-1, keepdims=True)
    return (x - mu) * lax.rsqrt(var + LN_EPS) * gamma + beta


def _encoder_kernel(x_ref, vecs_ref, w_in_ref, conv_w_ref, w_dt_ref, w_out_ref,
                    fln_ref, o_ref, *, seq_len, d_model, d_inner, num_layers):
    """One UnifiedMambaBlock (layer = inner grid axis) on an (rt, D) row tile.

    The output block is revisited across the layer axis, so it carries the
    residual for the whole stack; the final LayerNorm is fused into the last
    layer step.
    """
    l = pl.program_id(1)
    L = seq_len
    D = d_model
    C = d_inner

    # First layer: seed the resident residual with the embedded input.
    @pl.when(l == 0)
    def _():
        o_ref[...] = x_ref[...]

    x = o_ref[...]                                   # (R, D) f32 residual
    R = x.shape[0]

    vecs = vecs_ref[0]                               # (4, P) packed f32 vectors
    ln_g = vecs[0:1, :D]
    ln_b = vecs[1:2, :D]
    b_dt = vecs[2:3, :C]
    scale = vecs[3:4, :D]

    # ---- block LayerNorm over D ----
    xn = _layernorm(x, ln_g, ln_b)

    # ---- fused in_proj: one bf16 MXU matmul, f32 accumulation ----
    xp = jnp.dot(xn.astype(jnp.bfloat16), w_in_ref[0],
                 preferred_element_type=jnp.float32)           # (R, 2C)
    x1 = xp[:, :C]
    gate2 = jax.nn.sigmoid(xp[:, C:])                # consume x2 half immediately

    # ---- depthwise conv1d (k=3, pad=1, groups=C) along the sequence ----
    row = lax.broadcasted_iota(jnp.int32, (R, 1), 0)
    not_first = (row % L != 0).astype(jnp.float32)       # zero x[l-1] at l == 0
    not_last = (row % L != L - 1).astype(jnp.float32)    # zero x[l+1] at l == L-1
    taps = conv_w_ref[0].astype(jnp.float32)             # (3, C)
    x1 = ((pltpu.roll(x1, shift=1, axis=0) * not_first) * taps[0:1, :]
          + x1 * taps[1:2, :]
          + (pltpu.roll(x1, shift=R - 1, axis=0) * not_last) * taps[2:3, :])

    # ---- SiLU ----
    x1 = x1 * jax.nn.sigmoid(x1)

    # ---- dt_proj + sigmoid(softplus(.)) + gating ----
    dt = jnp.dot(x1.astype(jnp.bfloat16), w_dt_ref[0],
                 preferred_element_type=jnp.float32) + b_dt
    # sigmoid(softplus(dt)) = (1 + e^dt) / (2 + e^dt), overflow-safe with
    # t = exp(-|dt|):  dt >= 0 -> (1+t)/(1+2t),  dt < 0 -> (1+t)/(2+t).
    t = jnp.exp(-jnp.abs(dt))
    denom = jnp.where(dt >= 0, 1.0 + 2.0 * t, 2.0 + t)
    x1 = x1 * ((1.0 + t) * pl.reciprocal(denom, approx=True)) * gate2

    # ---- out_proj + layer_scale + residual (dropout = identity in eval) ----
    out = jnp.dot(x1.astype(jnp.bfloat16), w_out_ref[0],
                  preferred_element_type=jnp.float32)
    out = out * scale + x
    o_ref[...] = out

    # Encoder's final LayerNorm fused into the last layer step.
    @pl.when(l == num_layers - 1)
    def _():
        o_ref[...] = _layernorm(out, fln_ref[0:1, :], fln_ref[1:2, :])


# ----------------------------- wrappers ------------------------------------ #

def _plan_row_tile(B, L):
    """Pick (rows-per-grid-step, vmem_limit) per chip generation.

    Row tiles are whole sequences; when the batch is split the tile row count
    is kept a multiple of 8 (sublane) so stores stay unmasked and the (8,128)
    BlockSpec rule holds.
    """
    kind = ""
    try:
        kind = jax.devices()[0].device_kind.lower()
    except Exception:
        pass
    is_v7 = ("v7" in kind) or ("7x" in kind)
    # v7x: 64 MiB physical per TC -> leave headroom; v5e/v6e: 128 MiB physical.
    vmem_limit = (48 if is_v7 else 100) * 1024 * 1024
    target_rows = 512 if is_v7 else 2048

    rows = B * L
    rt = rows                                   # full slab always legal
    for bt in range(1, B + 1):
        if B % bt:
            continue
        cand = bt * L
        if cand > max(target_rows, L):
            break
        if bt < B and cand % 8 != 0:
            continue                            # keep sublane divisibility
        rt = cand
    if is_v7 and rt == rows and B > 1:
        # dual-TC chip: prefer >=2 row tiles so both TensorCores get work.
        for bt in range(B // 2, 0, -1):
            if B % bt == 0 and (bt * L) % 8 == 0:
                rt = bt * L
                break
    # TODO(synk): for B == 1 with very long L on v7x, add an L-tile grid axis
    # with a 1-row halo so both TensorCores get work and the tile fits VMEM.
    return rt, vmem_limit


def mamba_stack(x, params):
    """All UnifiedMambaBlocks + final LayerNorm in a single pallas_call."""
    B, L, D = x.shape
    C = params["d_inner"]
    NL = params["num_layers"]
    P = params["vecs"].shape[-1]
    rows = B * L
    rt, vmem_limit = _plan_row_tile(B, L)
    x2d = x.reshape(rows, D)

    kernel = functools.partial(_encoder_kernel, seq_len=L, d_model=D,
                               d_inner=C, num_layers=NL)

    flops = 2 * rows * NL * (D * 2 * C + C * C + C * D + 3 * C)
    bytes_accessed = (2 * rows * D * 4                               # x in / out (f32)
                      + NL * (D * 2 * C + C * C + C * D + 3 * C) * 2  # bf16 weights
                      + NL * 4 * P * 4 + 2 * D * 4)                   # packed vectors

    out2d = pl.pallas_call(
        kernel,
        out_shape=jax.ShapeDtypeStruct((rows, D), jnp.float32),
        grid=(rows // rt, NL),
        in_specs=[
            pl.BlockSpec((rt, D), lambda i, l: (i, 0)),           # input rows
            pl.BlockSpec((1, 4, P), lambda i, l: (l, 0, 0)),      # packed ln/bias/scale
            pl.BlockSpec((1, D, 2 * C), lambda i, l: (l, 0, 0)),  # fused in_proj (bf16)
            pl.BlockSpec((1, 3, C), lambda i, l: (l, 0, 0)),      # conv taps (bf16)
            pl.BlockSpec((1, C, C), lambda i, l: (l, 0, 0)),      # dt_proj (bf16)
            pl.BlockSpec((1, C, D), lambda i, l: (l, 0, 0)),      # out_proj (bf16)
            pl.BlockSpec((2, D), lambda i, l: (0, 0)),            # final LN gamma/beta
        ],
        out_specs=pl.BlockSpec((rt, D), lambda i, l: (i, 0)),     # resident residual
        compiler_params=pltpu.CompilerParams(
            dimension_semantics=("parallel", "arbitrary"),
            vmem_limit_bytes=vmem_limit),
        cost_estimate=pl.CostEstimate(
            flops=flops,
            transcendentals=4 * rows * NL * C,
            bytes_accessed=bytes_accessed),
    )(x2d, params["vecs"], params["w_in"], params["conv_w"],
      params["w_dt"], params["w_out"], params["fln"])
    return out2d.reshape(B, L, D)


def encoder_forward(tokens, params, return_sequence=True):
    """E768H768TextEncoder.forward (eval mode)."""
    B, L = tokens.shape
    # glue: embedding gather + positional encoding add (dropout = identity)
    x = jnp.take(params["embedding"], tokens, axis=0)             # (B, L, D)
    x = x + params["pos_encoding"][:, :L, :]
    if params["num_layers"] == 0:      # degenerate config: only the final LN
        x = _layernorm(x, params["fln"][0:1], params["fln"][1:2])
    else:
        x = mamba_stack(x, params)
    return x if return_sequence else x.mean(axis=1)


# ----------------------------- parameter init ------------------------------ #

def init_params(key, vocab_size, embed_dim, expand_factor, num_layers,
                max_pos=2048):
    D = embed_dim
    C = int(embed_dim * expand_factor)
    P = max(D, C)
    keys = jax.random.split(key, 2 + max(num_layers, 1))

    def uni(k, shape, fan_in, dtype=jnp.float32):
        bound = 1.0 / float(fan_in) ** 0.5
        w = jax.random.uniform(k, shape, jnp.float32, -bound, bound)
        return w.astype(dtype)

    params = {
        "embedding": jax.random.normal(keys[0], (vocab_size, D), jnp.float32),
        "pos_encoding": 0.02 * jax.random.normal(keys[1], (1, max_pos, D),
                                                 jnp.float32),
        # final LayerNorm [gamma; beta] packed as (2, D)
        "fln": jnp.concatenate([jnp.ones((1, D), jnp.float32),
                                jnp.zeros((1, D), jnp.float32)], axis=0),
        "num_layers": num_layers,
        "d_model": D,
        "d_inner": C,
    }

    vecs, w_in, conv_w, w_dt, w_out = [], [], [], [], []
    for i in range(num_layers):
        lk = jax.random.split(keys[2 + i], 5)
        # packed per-layer vectors: [ln_gamma(D), ln_beta(D), dt_bias(C), scale(D)]
        v = jnp.zeros((4, P), jnp.float32)
        v = v.at[0, :D].set(1.0)                        # LayerNorm gamma
        v = v.at[2, :C].set(uni(lk[3], (C,), C))        # dt_proj bias
        v = v.at[3, :D].set(0.1)                        # layer_scale init
        vecs.append(v)
        # nn.Linear weight is (out, in); we store W.T so the kernel does x @ W.T.
        # Torch depthwise Conv1d weight is (C, 1, 3); we store its (3, C) transpose.
        w_in.append(uni(lk[0], (D, 2 * C), D, jnp.bfloat16))  # [:, :C]=x1, [:, C:]=x2
        conv_w.append(uni(lk[1], (3, C), 3, jnp.bfloat16))
        w_dt.append(uni(lk[2], (C, C), C, jnp.bfloat16))
        w_out.append(uni(lk[4], (C, D), C, jnp.bfloat16))

    if num_layers:
        params["vecs"] = jnp.stack(vecs)        # (NL, 4, P)  f32
        params["w_in"] = jnp.stack(w_in)        # (NL, D, 2C) bf16
        params["conv_w"] = jnp.stack(conv_w)    # (NL, 3, C)  bf16
        params["w_dt"] = jnp.stack(w_dt)        # (NL, C, C)  bf16
        params["w_out"] = jnp.stack(w_out)      # (NL, C, D)  bf16
    return params


# ----------------------------- main ---------------------------------------- #

if __name__ == "__main__":
    # small shapes consistent with the module's forward
    B, L = 2, 8
    vocab_size = 100
    embed_dim = 32            # D
    expand_factor = 1.5       # d_inner = 48
    num_layers = 4

    key = jax.random.PRNGKey(0)
    pkey, tkey = jax.random.split(key)
    params = init_params(pkey, vocab_size, embed_dim, expand_factor, num_layers)
    tokens = jax.random.randint(tkey, (B, L), 0, vocab_size, dtype=jnp.int32)

    out = encoder_forward(tokens, params, return_sequence=True)
    out = jax.block_until_ready(out)
    assert out.shape == (B, L, embed_dim) and out.dtype == jnp.float32
    assert bool(jnp.all(jnp.isfinite(out)))
    print("KERNEL_OK")
</pallas_src>

<mosaic_0001>
module attributes {stable_mosaic.version = 11 : i64} {
  func.func @_encoder_kernel(%arg0: i32, %arg1: i32, %arg2: memref<16x32xf32, #tpu.memory_space<vmem>>, %arg3: memref<1x4x48xf32, #tpu.memory_space<vmem>>, %arg4: memref<1x32x96xbf16, #tpu.memory_space<vmem>>, %arg5: memref<1x3x48xbf16, #tpu.memory_space<vmem>>, %arg6: memref<1x48x48xbf16, #tpu.memory_space<vmem>>, %arg7: memref<1x48x32xbf16, #tpu.memory_space<vmem>>, %arg8: memref<2x32xf32, #tpu.memory_space<vmem>>, %arg9: memref<16x32xf32, #tpu.memory_space<vmem>>) attributes {dimension_semantics = [#tpu.dimension_semantics<parallel>, #tpu.dimension_semantics<arbitrary>], iteration_bounds = array<i64: 1, 4>, scalar_prefetch = 0 : i64, scratch_operands = 0 : i64, tpu.core_type = #tpu.core_type<tc>, window_params = [{transform_indices = @transform_0, window_bounds = array<i64: 16, 32>}, {transform_indices = @transform_1, window_bounds = array<i64: 1, 4, 48>}, {transform_indices = @transform_2, window_bounds = array<i64: 1, 32, 96>}, {transform_indices = @transform_3, window_bounds = array<i64: 1, 3, 48>}, {transform_indices = @transform_4, window_bounds = array<i64: 1, 48, 48>}, {transform_indices = @transform_5, window_bounds = array<i64: 1, 48, 32>}, {pipeline_mode = #tpu.pipeline_mode<synchronous>, transform_indices = @transform_6, window_bounds = array<i64: 2, 32>}, {transform_indices = @transform_7, window_bounds = array<i64: 16, 32>}]} {
    %c0_i32 = arith.constant 0 : i32
    %0 = arith.cmpi eq, %arg1, %c0_i32 : i32
    %1 = arith.extui %0 : i1 to i32
    %c0_i32_0 = arith.constant 0 : i32
    %2 = arith.cmpi ne, %1, %c0_i32_0 : i32
    scf.if %2 {
      %c0_47 = arith.constant 0 : index
      %c0_48 = arith.constant 0 : index
      %146 = vector.load %arg2[%c0_47, %c0_48] : memref<16x32xf32, #tpu.memory_space<vmem>>, vector<16x32xf32>
      %c0_49 = arith.constant 0 : index
      %c0_50 = arith.constant 0 : index
      %147 = vector.load %arg9[%c0_49, %c0_50] : memref<16x32xf32, #tpu.memory_space<vmem>>, vector<16x32xf32>
      tpu.vector_store %arg9[%c0_49, %c0_50], %146 {strides = array<i32>} : memref<16x32xf32, #tpu.memory_space<vmem>>, vector<16x32xf32>,
    } else {
    }
    %c0 = arith.constant 0 : index
    %c0_1 = arith.constant 0 : index
    %3 = vector.load %arg9[%c0, %c0_1] : memref<16x32xf32, #tpu.memory_space<vmem>>, vector<16x32xf32>
    %c0_2 = arith.constant 0 : index
    %c0_3 = arith.constant 0 : index
    %c0_4 = arith.constant 0 : index
    %4 = vector.load %arg3[%c0_2, %c0_3, %c0_4] : memref<1x4x48xf32, #tpu.memory_space<vmem>>, vector<1x4x48xf32>
    %5 = vector.shape_cast %4 : vector<1x4x48xf32> to vector<4x48xf32>
    %6 = vector.extract_strided_slice %5 {offsets = [0, 0], sizes = [1, 32], strides = [1, 1]} : vector<4x48xf32> to vector<1x32xf32>
    %7 = vector.extract_strided_slice %5 {offsets = [1, 0], sizes = [1, 32], strides = [1, 1]} : vector<4x48xf32> to vector<1x32xf32>
    %8 = vector.extract_strided_slice %5 {offsets = [2, 0], sizes = [1, 48], strides = [1, 1]} : vector<4x48xf32> to vector<1x48xf32>
    %9 = vector.extract_strided_slice %5 {offsets = [3, 0], sizes = [1, 32], strides = [1, 1]} : vector<4x48xf32> to vector<1x32xf32>
    %cst = arith.constant dense<0.000000e+00> : vector<16xf32>
    %10 = vector.multi_reduction <add>, %3, %cst [1] : vector<16x32xf32> to vector<16xf32>
    %11 = vector.shape_cast %10 : vector<16xf32> to vector<16x1xf32>
    %cst_5 = arith.constant 3.200000e+01 : f32
    %12 = vector.broadcast %cst_5 : f32 to vector<16x1xf32>
    %13 = arith.divf %11, %12 : vector<16x1xf32>
    %14 = vector.broadcast %13 : vector<16x1xf32> to vector<16x32xf32>
    %15 = arith.subf %3, %14 : vector<16x32xf32>
    %16 = arith.mulf %15, %15 : vector<16x32xf32>
    %cst_6 = arith.constant dense<0.000000e+00> : vector<16xf32>
    %17 = vector.multi_reduction <add>, %16, %cst_6 [1] : vector<16x32xf32> to vector<16xf32>
    %18 = vector.shape_cast %17 : vector<16xf32> to vector<16x1xf32>
    %cst_7 = arith.constant 3.200000e+01 : f32
    %19 = vector.broadcast %cst_7 : f32 to vector<16x1xf32>
    %20 = arith.divf %18, %19 : vector<16x1xf32>
    %21 = vector.broadcast %13 : vector<16x1xf32> to vector<16x32xf32>
    %22 = arith.subf %3, %21 : vector<16x32xf32>
    %cst_8 = arith.constant 9.99999974E-6 : f32
    %23 = vector.broadcast %cst_8 : f32 to vector<16x1xf32>
    %24 = arith.addf %20, %23 : vector<16x1xf32>
    %25 = math.rsqrt %24 : vector<16x1xf32>
    %26 = vector.broadcast %25 : vector<16x1xf32> to vector<16x32xf32>
    %27 = arith.mulf %22, %26 : vector<16x32xf32>
    %28 = vector.broadcast %6 : vector<1x32xf32> to vector<16x32xf32>
    %29 = arith.mulf %27, %28 : vector<16x32xf32>
    %30 = vector.broadcast %7 : vector<1x32xf32> to vector<16x32xf32>
    %31 = arith.addf %29, %30 : vector<16x32xf32>
    %32 = arith.truncf %31 : vector<16x32xf32> to vector<16x32xbf16>
    %c0_9 = arith.constant 0 : index
    %c0_10 = arith.constant 0 : index
    %c0_11 = arith.constant 0 : index
    %33 = vector.load %arg4[%c0_9, %c0_10, %c0_11] : memref<1x32x96xbf16, #tpu.memory_space<vmem>>, vector<1x32x96xbf16>
    %34 = vector.shape_cast %33 : vector<1x32x96xbf16> to vector<32x96xbf16>
    %cst_12 = arith.constant dense<0.000000e+00> : vector<16x96xf32>
    %35 = tpu.matmul %32, %34, %cst_12 {dimension_numbers = #tpu.dot_dimension_numbers<[1], [0], [0], [1], [0, 0, 1, 1], [], []>} : vector<16x32xbf16>, vector<32x96xbf16>, vector<16x96xf32> -> vector<16x96xf32>
    %36 = vector.extract_strided_slice %35 {offsets = [0, 0], sizes = [16, 48], strides = [1, 1]} : vector<16x96xf32> to vector<16x48xf32>
    %37 = vector.extract_strided_slice %35 {offsets = [0, 48], sizes = [16, 48], strides = [1, 1]} : vector<16x96xf32> to vector<16x48xf32>
    %38 = arith.negf %37 : vector<16x48xf32>
    %39 = math.exp %38 : vector<16x48xf32>
    %cst_13 = arith.constant 1.000000e+00 : f32
    %40 = vector.broadcast %cst_13 : f32 to vector<16x48xf32>
    %41 = arith.addf %40, %39 : vector<16x48xf32>
    %42 = arith.divf %40, %41 : vector<16x48xf32>
    %43 = tpu.iota {dimensions = array<i32: 0>} : vector<16x1xi32>
    %c8_i32 = arith.constant 8 : i32
    %c0_i32_14 = arith.constant 0 : i32
    %44 = arith.cmpi eq, %c8_i32, %c0_i32_14 : i32
    %c1_i32 = arith.constant 1 : i32
    %45 = arith.select %44, %c1_i32, %c8_i32 : i32
    %46 = vector.broadcast %45 : i32 to vector<16x1xi32>
    %47 = arith.remsi %43, %46 : vector<16x1xi32>
    %c0_i32_15 = arith.constant 0 : i32
    %48 = vector.broadcast %c0_i32_15 : i32 to vector<16x1xi32>
    %49 = arith.cmpi ne, %47, %48 : vector<16x1xi32>
    %c0_i32_16 = arith.constant 0 : i32
    %50 = vector.broadcast %c0_i32_16 : i32 to vector<16x1xi32>
    %51 = arith.cmpi slt, %47, %50 : vector<16x1xi32>
    %c0_i32_17 = arith.constant 0 : i32
    %52 = arith.cmpi slt, %45, %c0_i32_17 : i32
    %53 = vector.broadcast %52 : i1 to vector<16x1xi1>
    %54 = vector.broadcast %53 : vector<16x1xi1> to vector<16x1xi1>
    %55 = arith.xori %51, %54 : vector<16x1xi1>
    %56 = arith.andi %55, %49 : vector<16x1xi1>
    %57 = vector.broadcast %45 : i32 to vector<16x1xi32>
    %58 = arith.addi %47, %57 : vector<16x1xi32>
    %59 = arith.select %56, %58, %47 : vector<16x1xi1>, vector<16x1xi32>
    %c0_i32_18 = arith.constant 0 : i32
    %60 = vector.broadcast %c0_i32_18 : i32 to vector<16x1xi32>
    %61 = arith.cmpi ne, %59, %60 : vector<16x1xi32>
    %62 = arith.extui %61 : vector<16x1xi1> to vector<16x1xi32>
    %63 = arith.sitofp %62 : vector<16x1xi32> to vector<16x1xf32>
    %c8_i32_19 = arith.constant 8 : i32
    %c0_i32_20 = arith.constant 0 : i32
    %64 = arith.cmpi eq, %c8_i32_19, %c0_i32_20 : i32
    %c1_i32_21 = arith.constant 1 : i32
    %65 = arith.select %64, %c1_i32_21, %c8_i32_19 : i32
    %66 = vector.broadcast %65 : i32 to vector<16x1xi32>
    %67 = arith.remsi %43, %66 : vector<16x1xi32>
    %c0_i32_22 = arith.constant 0 : i32
    %68 = vector.broadcast %c0_i32_22 : i32 to vector<16x1xi32>
    %69 = arith.cmpi ne, %67, %68 : vector<16x1xi32>
    %c0_i32_23 = arith.constant 0 : i32
    %70 = vector.broadcast %c0_i32_23 : i32 to vector<16x1xi32>
    %71 = arith.cmpi slt, %67, %70 : vector<16x1xi32>
    %c0_i32_24 = arith.constant 0 : i32
    %72 = arith.cmpi slt, %65, %c0_i32_24 : i32
    %73 = vector.broadcast %72 : i1 to vector<16x1xi1>
    %74 = vector.broadcast %73 : vector<16x1xi1> to vector<16x1xi1>
    %75 = arith.xori %71, %74 : vector<16x1xi1>
    %76 = arith.andi %75, %69 : vector<16x1xi1>
    %77 = vector.broadcast %65 : i32 to vector<16x1xi32>
    %78 = arith.addi %67, %77 : vector<16x1xi32>
    %79 = arith.select %76, %78, %67 : vector<16x1xi1>, vector<16x1xi32>
    %c7_i32 = arith.constant 7 : i32
    %80 = vector.broadcast %c7_i32 : i32 to vector<16x1xi32>
    %81 = arith.cmpi ne, %79, %80 : vector<16x1xi32>
    %82 = arith.extui %81 : vector<16x1xi1> to vector<16x1xi32>
    %83 = arith.sitofp %82 : vector<16x1xi32> to vector<16x1xf32>
    %c0_25 = arith.constant 0 : index
    %c0_26 = arith.constant 0 : index
    %c0_27 = arith.constant 0 : index
    %84 = vector.load %arg5[%c0_25, %c0_26, %c0_27] : memref<1x3x48xbf16, #tpu.memory_space<vmem>>, vector<1x3x48xbf16>
    %85 = vector.shape_cast %84 : vector<1x3x48xbf16> to vector<3x48xbf16>
    %86 = arith.extf %85 : vector<3x48xbf16> to vector<3x48xf32>
    %c1_i32_28 = arith.constant 1 : i32
    %87 = tpu.dynamic_rotate %36 by %c1_i32_28 dim 0 : vector<16x48xf32>, i32 -> vector<16x48xf32>
    %88 = vector.broadcast %63 : vector<16x1xf32> to vector<16x48xf32>
    %89 = arith.mulf %87, %88 : vector<16x48xf32>
    %90 = vector.extract_strided_slice %86 {offsets = [0, 0], sizes = [1, 48], strides = [1, 1]} : vector<3x48xf32> to vector<1x48xf32>
    %91 = vector.broadcast %90 : vector<1x48xf32> to vector<16x48xf32>
    %92 = arith.mulf %89, %91 : vector<16x48xf32>
    %93 = vector.extract_strided_slice %86 {offsets = [1, 0], sizes = [1, 48], strides = [1, 1]} : vector<3x48xf32> to vector<1x48xf32>
    %94 = vector.broadcast %93 : vector<1x48xf32> to vector<16x48xf32>
    %95 = arith.mulf %36, %94 : vector<16x48xf32>
    %96 = arith.addf %92, %95 : vector<16x48xf32>
    %c15_i32 = arith.constant 15 : i32
    %97 = tpu.dynamic_rotate %36 by %c15_i32 dim 0 : vector<16x48xf32>, i32 -> vector<16x48xf32>
    %98 = vector.broadcast %83 : vector<16x1xf32> to vector<16x48xf32>
    %99 = arith.mulf %97, %98 : vector<16x48xf32>
    %100 = vector.extract_strided_slice %86 {offsets = [2, 0], sizes = [1, 48], strides = [1, 1]} : vector<3x48xf32> to vector<1x48xf32>
    %101 = vector.broadcast %100 : vector<1x48xf32> to vector<16x48xf32>
    %102 = arith.mulf %99, %101 : vector<16x48xf32>
    %103 = arith.addf %96, %102 : vector<16x48xf32>
    %104 = arith.negf %103 : vector<16x48xf32>
    %105 = math.exp %104 : vector<16x48xf32>
    %cst_29 = arith.constant 1.000000e+00 : f32
    %106 = vector.broadcast %cst_29 : f32 to vector<16x48xf32>
    %107 = arith.addf %106, %105 : vector<16x48xf32>
    %108 = arith.divf %106, %107 : vector<16x48xf32>
    %109 = arith.mulf %103, %108 : vector<16x48xf32>
    %110 = arith.truncf %109 : vector<16x48xf32> to vector<16x48xbf16>
    %c0_30 = arith.constant 0 : index
    %c0_31 = arith.constant 0 : index
    %c0_32 = arith.constant 0 : index
    %111 = vector.load %arg6[%c0_30, %c0_31, %c0_32] : memref<1x48x48xbf16, #tpu.memory_space<vmem>>, vector<1x48x48xbf16>
    %112 = vector.shape_cast %111 : vector<1x48x48xbf16> to vector<48x48xbf16>
    %cst_33 = arith.constant dense<0.000000e+00> : vector<16x48xf32>
    %113 = tpu.matmul %110, %112, %cst_33 {dimension_numbers = #tpu.dot_dimension_numbers<[1], [0], [0], [1], [0, 0, 1, 1], [], []>} : vector<16x48xbf16>, vector<48x48xbf16>, vector<16x48xf32> -> vector<16x48xf32>
    %114 = vector.broadcast %8 : vector<1x48xf32> to vector<16x48xf32>
    %115 = arith.addf %113, %114 : vector<16x48xf32>
    %116 = math.absf %115 : vector<16x48xf32>
    %cst_34 = arith.constant 0.000000e+00 : f32
    %117 = vector.broadcast %cst_34 : f32 to vector<16x48xf32>
    %118 = arith.subf %117, %116 : vector<16x48xf32>
    %119 = math.exp %118 : vector<16x48xf32>
    %cst_35 = arith.constant 0.000000e+00 : f32
    %120 = vector.broadcast %cst_35 : f32 to vector<16x48xf32>
    %121 = arith.cmpf oge, %115, %120 : vector<16x48xf32>
    %cst_36 = arith.constant 2.000000e+00 : f32
    %122 = vector.broadcast %cst_36 : f32 to vector<16x48xf32>
    %123 = arith.mulf %122, %119 : vector<16x48xf32>
    %cst_37 = arith.constant 1.000000e+00 : f32
    %124 = vector.broadcast %cst_37 : f32 to vector<16x48xf32>
    %125 = arith.addf %124, %123 : vector<16x48xf32>
    %cst_38 = arith.constant 2.000000e+00 : f32
    %126 = vector.broadcast %cst_38 : f32 to vector<16x48xf32>
    %127 = arith.addf %126, %119 : vector<16x48xf32>
    %128 = arith.select %121, %125, %127 : vector<16x48xi1>, vector<16x48xf32>
    %cst_39 = arith.constant 1.000000e+00 : f32
    %129 = vector.broadcast %cst_39 : f32 to vector<16x48xf32>
    %130 = arith.addf %129, %119 : vector<16x48xf32>
    %131 = tpu.reciprocal %128 {approx = true} : vector<16x48xf32> -> vector<16x48xf32>
    %132 = arith.mulf %130, %131 : vector<16x48xf32>
    %133 = arith.mulf %109, %132 : vector<16x48xf32>
    %134 = arith.mulf %133, %42 : vector<16x48xf32>
    %135 = arith.truncf %134 : vector<16x48xf32> to vector<16x48xbf16>
    %c0_40 = arith.constant 0 : index
    %c0_41 = arith.constant 0 : index
    %c0_42 = arith.constant 0 : index
    %136 = vector.load %arg7[%c0_40, %c0_41, %c0_42] : memref<1x48x32xbf16, #tpu.memory_space<vmem>>, vector<1x48x32xbf16>
    %137 = vector.shape_cast %136 : vector<1x48x32xbf16> to vector<48x32xbf16>
    %cst_43 = arith.constant dense<0.000000e+00> : vector<16x32xf32>
    %138 = tpu.matmul %135, %137, %cst_43 {dimension_numbers = #tpu.dot_dimension_numbers<[1], [0], [0], [1], [0, 0, 1, 1], [], []>} : vector<16x48xbf16>, vector<48x32xbf16>, vector<16x32xf32> -> vector<16x32xf32>
    %139 = vector.broadcast %9 : vector<1x32xf32> to vector<16x32xf32>
    %140 = arith.mulf %138, %139 : vector<16x32xf32>
    %141 = arith.addf %140, %3 : vector<16x32xf32>
    %c0_44 = arith.constant 0 : index
    %c0_45 = arith.constant 0 : index
    %142 = vector.load %arg9[%c0_44, %c0_45] : memref<16x32xf32, #tpu.memory_space<vmem>>, vector<16x32xf32>
    tpu.vector_store %arg9[%c0_44, %c0_45], %141 {strides = array<i32>} : memref<16x32xf32, #tpu.memory_space<vmem>>, vector<16x32xf32>,
    %c3_i32 = arith.constant 3 : i32
    %143 = arith.cmpi eq, %arg1, %c3_i32 : i32
    %144 = arith.extui %143 : i1 to i32
    %c0_i32_46 = arith.constant 0 : i32
    %145 = arith.cmpi ne, %144, %c0_i32_46 : i32
    scf.if %145 {
      %c0_47 = arith.constant 0 : index
      %c0_48 = arith.constant 0 : index
      %146 = vector.load %arg8[%c0_47, %c0_48] : memref<2x32xf32, #tpu.memory_space<vmem>>, vector<1x32xf32>
      %c1 = arith.constant 1 : index
      %c0_49 = arith.constant 0 : index
      %147 = vector.load %arg8[%c1, %c0_49] : memref<2x32xf32, #tpu.memory_space<vmem>>, vector<1x32xf32>
      %cst_50 = arith.constant dense<0.000000e+00> : vector<16xf32>
      %148 = vector.multi_reduction <add>, %141, %cst_50 [1] : vector<16x32xf32> to vector<16xf32>
      %149 = vector.shape_cast %148 : vector<16xf32> to vector<16x1xf32>
      %cst_51 = arith.constant 3.200000e+01 : f32
      %150 = vector.broadcast %cst_51 : f32 to vector<16x1xf32>
      %151 = arith.divf %149, %150 : vector<16x1xf32>
      %152 = vector.broadcast %151 : vector<16x1xf32> to vector<16x32xf32>
      %153 = arith.subf %141, %152 : vector<16x32xf32>
      %154 = arith.mulf %153, %153 : vector<16x32xf32>
      %cst_52 = arith.constant dense<0.000000e+00> : vector<16xf32>
      %155 = vector.multi_reduction <add>, %154, %cst_52 [1] : vector<16x32xf32> to vector<16xf32>
      %156 = vector.shape_cast %155 : vector<16xf32> to vector<16x1xf32>
      %cst_53 = arith.constant 3.200000e+01 : f32
      %157 = vector.broadcast %cst_53 : f32 to vector<16x1xf32>
      %158 = arith.divf %156, %157 : vector<16x1xf32>
      %159 = vector.broadcast %151 : vector<16x1xf32> to vector<16x32xf32>
      %160 = arith.subf %141, %159 : vector<16x32xf32>
      %cst_54 = arith.constant 9.99999974E-6 : f32
      %161 = vector.broadcast %cst_54 : f32 to vector<16x1xf32>
      %162 = arith.addf %158, %161 : vector<16x1xf32>
      %163 = math.rsqrt %162 : vector<16x1xf32>
      %164 = vector.broadcast %163 : vector<16x1xf32> to vector<16x32xf32>
      %165 = arith.mulf %160, %164 : vector<16x32xf32>
      %166 = vector.broadcast %146 : vector<1x32xf32> to vector<16x32xf32>
      %167 = arith.mulf %165, %166 : vector<16x32xf32>
      %168 = vector.broadcast %147 : vector<1x32xf32> to vector<16x32xf32>
      %169 = arith.addf %167, %168 : vector<16x32xf32>
      %c0_55 = arith.constant 0 : index
      %c0_56 = arith.constant 0 : index
      %170 = vector.load %arg9[%c0_55, %c0_56] : memref<16x32xf32, #tpu.memory_space<vmem>>, vector<16x32xf32>
      tpu.vector_store %arg9[%c0_55, %c0_56], %169 {strides = array<i32>} : memref<16x32xf32, #tpu.memory_space<vmem>>, vector<16x32xf32>,
    } else {
    }
    return
  }
  func.func @transform_0(%arg0: i32, %arg1: i32) -> (i32, i32) {
    %c0_i32 = arith.constant 0 : i32
    %c0_i32_0 = arith.constant 0 : i32
    return %arg0, %c0_i32 : i32, i32
  }
  func.func @transform_1(%arg0: i32, %arg1: i32) -> (i32, i32, i32) {
    %c0_i32 = arith.constant 0 : i32
    %c0_i32_0 = arith.constant 0 : i32
    %c0_i32_1 = arith.constant 0 : i32
    return %arg1, %c0_i32, %c0_i32_0 : i32, i32, i32
  }
  func.func @transform_2(%arg0: i32, %arg1: i32) -> (i32, i32, i32) {
    %c0_i32 = arith.constant 0 : i32
    %c0_i32_0 = arith.constant 0 : i32
    %c0_i32_1 = arith.constant 0 : i32
    return %arg1, %c0_i32, %c0_i32_0 : i32, i32, i32
  }
  func.func @transform_3(%arg0: i32, %arg1: i32) -> (i32, i32, i32) {
    %c0_i32 = arith.constant 0 : i32
    %c0_i32_0 = arith.constant 0 : i32
    %c0_i32_1 = arith.constant 0 : i32
    return %arg1, %c0_i32, %c0_i32_0 : i32, i32, i32
  }
  func.func @transform_4(%arg0: i32, %arg1: i32) -> (i32, i32, i32) {
    %c0_i32 = arith.constant 0 : i32
    %c0_i32_0 = arith.constant 0 : i32
    %c0_i32_1 = arith.constant 0 : i32
    return %arg1, %c0_i32, %c0_i32_0 : i32, i32, i32
  }
  func.func @transform_5(%arg0: i32, %arg1: i32) -> (i32, i32, i32) {
    %c0_i32 = arith.constant 0 : i32
    %c0_i32_0 = arith.constant 0 : i32
    %c0_i32_1 = arith.constant 0 : i32
    return %arg1, %c0_i32, %c0_i32_0 : i32, i32, i32
  }
  func.func @transform_6(%arg0: i32, %arg1: i32) -> (i32, i32) {
    %c0_i32 = arith.constant 0 : i32
    %c0_i32_0 = arith.constant 0 : i32
    %c0_i32_1 = arith.constant 0 : i32
    return %c0_i32, %c0_i32_0 : i32, i32
  }
  func.func @transform_7(%arg0: i32, %arg1: i32) -> (i32, i32) {
    %c0_i32 = arith.constant 0 : i32
    %c0_i32_0 = arith.constant 0 : i32
    return %arg0, %c0_i32 : i32, i32
  }
}

</mosaic_0001>

<llo_original>
// kernel: tpu_custom_call.1
$region0: #{tpu_custom_call.1}
  #allocation0 [shape = 'u32[]', space=smem, size = 0x4, offset = 0x4, fixed_abs, tag = 'smem constant byte address 0x4 - core index']
  #allocation1 [shape = 'u32[144,128]{1,0:T(1,128)}', space=vmem, size = 0x12000, scoped, tag = 'internal scratch']
  %s0 = inlined_call_operand.hbm [shape: f32[16,32], index: 0, kind: input, shape index: {}]
  %s1 = inlined_call_operand.hbm [shape: f32[4,4,48], index: 1, kind: input, shape index: {}]
  %s2 = inlined_call_operand.hbm [shape: bf16[4,32,96], index: 2, kind: input, shape index: {}]
  %s3 = inlined_call_operand.hbm [shape: bf16[4,3,48], index: 3, kind: input, shape index: {}]
  %s4 = inlined_call_operand.hbm [shape: bf16[4,48,48], index: 4, kind: input, shape index: {}]
  %s5 = inlined_call_operand.hbm [shape: bf16[4,48,32], index: 5, kind: input, shape index: {}]
  %s6 = inlined_call_operand.hbm [shape: f32[2,32], index: 6, kind: input, shape index: {}]
  %s7 = inlined_call_operand.hbm [shape: f32[16,32], index: 7, kind: output, shape index: {}]
  %s8 = sld [smem:[#allocation0]]
  $region97: #{tpu_custom_call.1} parent=0
    _
  %s10 = ssub.s32 1, %s8
  %s11 = scalar_select 0, %s10, %s8
  $region1: #{tpu_custom_call.1} parent=0
    #allocation2 [shape = 'u8[8192]{0}', space=vmem, size = 0x2000, scoped, tag = 'input window, operand 0, single buffered']
    #allocation3 [shape = 's32[2]{0}', space=sflag, size = 0x8, scoped, tag = 'scoped memory for tpu_custom_call.1']
    #allocation4 [shape = 's32[2]{0}', space=sflag, size = 0x8, scoped, tag = 'scoped memory for tpu_custom_call.1']
    #allocation5 [shape = 'u8[4096]{0}', space=vmem, size = 0x1000, scoped, tag = 'input window, operand 1']
    #allocation6 [shape = 's32[2]{0}', space=sflag, size = 0x8, scoped, tag = 'scoped memory for tpu_custom_call.1']
    #allocation7 [shape = 'u8[16384]{0}', space=vmem, size = 0x4000, scoped, tag = 'input window, operand 2']
    #allocation8 [shape = 'u8[2048]{0}', space=vmem, size = 0x800, scoped, tag = 'input window, operand 3']
    #allocation9 [shape = 's32[2]{0}', space=sflag, size = 0x8, scoped, tag = 'scoped memory for tpu_custom_call.1']
    #allocation10 [shape = 'u8[24576]{0}', space=vmem, size = 0x6000, scoped, tag = 'input window, operand 4']
    #allocation11 [shape = 'u8[24576]{0}', space=vmem, size = 0x6000, scoped, tag = 'input window, operand 5']
    #allocation12 [shape = 's32[2]{0}', space=sflag, size = 0x8, scoped, tag = 'scoped memory for tpu_custom_call.1']
    #allocation13 [shape = 'u8[1024]{0}', space=vmem, size = 0x400, scoped, tag = 'input window, operand 6, single buffered']
    #allocation14 [shape = 'u8[8192]{0}', space=vmem, size = 0x2000, scoped, tag = 'output window, operand 0, single buffered']
    %12 = vsyncpa [#allocation3], 0
    %13 = vsyncpa [#allocation6], 0
    %s14 = scalar_lea.sflag [#allocation6], 1
    %15 = vsyncpa %s14, 0
    %16 = vsyncpa [#allocation9], 0
    %s17 = scalar_lea.sflag [#allocation9], 1
    %18 = vsyncpa %s17, 0
    %19 = vsyncpa [#allocation12], 0
    %s20 = scalar_lea.sflag [#allocation12], 1
    %21 = vsyncpa %s20, 0
    %22 = vsyncpa [#allocation4], 0
    loop: start=0, step=1, limit=6
    $region2: #{tpu_custom_call.1} parent=1 // loop_pre_header
      _
    $region3: #{tpu_custom_call.1} parent=1 // loop_header
      %s24 = sphi 0, %s28
      %p25 = scmp.ge.s32.totalorder %s24, 6
      %s31 = sphi 0, %s43
      %s32 = sphi 0, %s39
      %s33 = sphi 0, %s31
      %s34 = sphi 0, %s32
      %s35 = sphi 0, %s33
      %s36 = sphi 0, %s34
      %s46 = sphi 0, %s48
      %s49 = sphi 0, %s46
      %s50 = sphi 0, %s49
      %s66 = sphi 0, %s50
      %s72 = sphi 0, %s74
      %s75 = sphi 0, %s72
      %s76 = sphi 0, %s75
      %s92 = sphi 0, %s76
      %s98 = sphi 0, %s100
      %s101 = sphi 0, %s98
      %s102 = sphi 0, %s101
      %s118 = sphi 0, %s102
      %s124 = sphi 0, %s126
      %s127 = sphi 0, %s124
      %s128 = sphi 0, %s127
      %s144 = sphi 0, %s128
      %s150 = sphi 0, %s152
      %s153 = sphi 0, %s150
      %s154 = sphi 0, %s153
      %s170 = sphi 0, %s154
      %s176 = sphi 0, %s178
      %s179 = sphi 0, %s176
      %s180 = sphi 0, %s179
      %s196 = sphi 0, %s180
      %s200 = sphi 0, %s200
      %s202 = sphi 0, %s200
      %s203 = sphi 0, %s202
      %s217 = sphi 0, %s203
      %s223 = sphi 0, %s225
      %s226 = sphi 0, %s223
      %s227 = sphi 0, %s226
      %s243 = sphi 0, %s227
    $region4: #{tpu_custom_call.1} parent=1 // loop_header_branch
      %27 = sbr.rel (%p25) target = $region8
    $region5: #{tpu_custom_call.1} parent=1 // loop_body
      %s29 = ssub.s32 %s24, 1
      %s30 = ssub.s32 %s24, 2
      %s37 = sadd.s32 1, %s32
      %p38 = scmp.ge.s32.totalorder %s37, 4
      %s39 = scalar_select %p38, 0, %s37
      %s40 = sadd.s32 1, %s31
      %s41 = scalar_select %p38, %s40, %s31
      %p42 = scmp.ge.s32.totalorder %s41, 1
      %s43 = scalar_select %p42, 0, %s41
      %s44 = ssub.s32 %s31, %s43
      %p45 = scmp.eq.s32.totalorder %s44, 0
      %s47 = sadd.s32 %s46, 1
      %s48 = scalar_select %p45, %s46, %s47
      %p51 = pneg %p45
      %p52 = scmp.eq.s32.totalorder %s24, 3
      %p53 = por %p51, %p52
      %p54 = scmp.ne.s32.totalorder %s46, %s49
      %p55 = scmp.eq.s32.totalorder %s24, 0
      %p56 = por %p54, %p55
      %p57 = scmp.ne.s32.totalorder %s46, %s49
      %p58 = scmp.eq.s32.totalorder %s29, 3
      %p59 = por %p57, %p58
      %p60 = scmp.ne.s32.totalorder %s49, %s50
      %p61 = scmp.eq.s32.totalorder %s29, 0
      %p62 = por %p60, %p61
      %p63 = scmp.ne.s32.totalorder %s49, %s50
      %p64 = scmp.eq.s32.totalorder %s30, 3
      %p65 = por %p63, %p64
      %p67 = scmp.ne.s32.totalorder %s50, %s66
      %p68 = scmp.eq.s32.totalorder %s30, 0
      %p69 = por %p67, %p68
      %s70 = ssub.s32 %s32, %s39
      %p71 = scmp.eq.s32.totalorder %s70, 0
      %s73 = sadd.s32 %s72, 1
      %s74 = scalar_select %p71, %s72, %s73
      %p77 = pneg %p71
      %p78 = scmp.eq.s32.totalorder %s24, 3
      %p79 = por %p77, %p78
      %p80 = scmp.ne.s32.totalorder %s72, %s75
      %p81 = scmp.eq.s32.totalorder %s24, 0
      %p82 = por %p80, %p81
      %p83 = scmp.ne.s32.totalorder %s72, %s75
      %p84 = scmp.eq.s32.totalorder %s29, 3
      %p85 = por %p83, %p84
      %p86 = scmp.ne.s32.totalorder %s75, %s76
      %p87 = scmp.eq.s32.totalorder %s29, 0
      %p88 = por %p86, %p87
      %p89 = scmp.ne.s32.totalorder %s75, %s76
      %p90 = scmp.eq.s32.totalorder %s30, 3
      %p91 = por %p89, %p90
      %p93 = scmp.ne.s32.totalorder %s76, %s92
      %p94 = scmp.eq.s32.totalorder %s30, 0
      %p95 = por %p93, %p94
      %s96 = ssub.s32 %s32, %s39
      %p97 = scmp.eq.s32.totalorder %s96, 0
      %s99 = sadd.s32 %s98, 1
      %s100 = scalar_select %p97, %s98, %s99
      %p103 = pneg %p97
      %p104 = scmp.eq.s32.totalorder %s24, 3
      %p105 = por %p103, %p104
      %p106 = scmp.ne.s32.totalorder %s98, %s101
      %p107 = scmp.eq.s32.totalorder %s24, 0
      %p108 = por %p106, %p107
      %p109 = scmp.ne.s32.totalorder %s98, %s101
      %p110 = scmp.eq.s32.totalorder %s29, 3
      %p111 = por %p109, %p110
      %p112 = scmp.ne.s32.totalorder %s101, %s102
      %p113 = scmp.eq.s32.totalorder %s29, 0
      %p114 = por %p112, %p113
      %p115 = scmp.ne.s32.totalorder %s101, %s102
      %p116 = scmp.eq.s32.totalorder %s30, 3
      %p117 = por %p115, %p116
      %p119 = scmp.ne.s32.totalorder %s102, %s118
      %p120 = scmp.eq.s32.totalorder %s30, 0
      %p121 = por %p119, %p120
      %s122 = ssub.s32 %s32, %s39
      %p123 = scmp.eq.s32.totalorder %s122, 0
      %s125 = sadd.s32 %s124, 1
      %s126 = scalar_select %p123, %s124, %s125
      %p129 = pneg %p123
      %p130 = scmp.eq.s32.totalorder %s24, 3
      %p131 = por %p129, %p130
      %p132 = scmp.ne.s32.totalorder %s124, %s127
      %p133 = scmp.eq.s32.totalorder %s24, 0
      %p134 = por %p132, %p133
      %p135 = scmp.ne.s32.totalorder %s124, %s127
      %p136 = scmp.eq.s32.totalorder %s29, 3
      %p137 = por %p135, %p136
      %p138 = scmp.ne.s32.totalorder %s127, %s128
      %p139 = scmp.eq.s32.totalorder %s29, 0
      %p140 = por %p138, %p139
      %p141 = scmp.ne.s32.totalorder %s127, %s128
      %p142 = scmp.eq.s32.totalorder %s30, 3
      %p143 = por %p141, %p142
      %p145 = scmp.ne.s32.totalorder %s128, %s144
      %p146 = scmp.eq.s32.totalorder %s30, 0
      %p147 = por %p145, %p146
      %s148 = ssub.s32 %s32, %s39
      %p149 = scmp.eq.s32.totalorder %s148, 0
      %s151 = sadd.s32 %s150, 1
      %s152 = scalar_select %p149, %s150, %s151
      %p155 = pneg %p149
      %p156 = scmp.eq.s32.totalorder %s24, 3
      %p157 = por %p155, %p156
      %p158 = scmp.ne.s32.totalorder %s150, %s153
      %p159 = scmp.eq.s32.totalorder %s24, 0
      %p160 = por %p158, %p159
      %p161 = scmp.ne.s32.totalorder %s150, %s153
      %p162 = scmp.eq.s32.totalorder %s29, 3
      %p163 = por %p161, %p162
      %p164 = scmp.ne.s32.totalorder %s153, %s154
      %p165 = scmp.eq.s32.totalorder %s29, 0
      %p166 = por %p164, %p165
      %p167 = scmp.ne.s32.totalorder %s153, %s154
      %p168 = scmp.eq.s32.totalorder %s30, 3
      %p169 = por %p167, %p168
      %p171 = scmp.ne.s32.totalorder %s154, %s170
      %p172 = scmp.eq.s32.totalorder %s30, 0
      %p173 = por %p171, %p172
      %s174 = ssub.s32 %s32, %s39
      %p175 = scmp.eq.s32.totalorder %s174, 0
      %s177 = sadd.s32 %s176, 1
      %s178 = scalar_select %p175, %s176, %s177
      %p181 = pneg %p175
      %p182 = scmp.eq.s32.totalorder %s24, 3
      %p183 = por %p181, %p182
      %p184 = scmp.ne.s32.totalorder %s176, %s179
      %p185 = scmp.eq.s32.totalorder %s24, 0
      %p186 = por %p184, %p185
      %p187 = scmp.ne.s32.totalorder %s176, %s179
      %p188 = scmp.eq.s32.totalorder %s29, 3
      %p189 = por %p187, %p188
      %p190 = scmp.ne.s32.totalorder %s179, %s180
      %p191 = scmp.eq.s32.totalorder %s29, 0
      %p192 = por %p190, %p191
      %p193 = scmp.ne.s32.totalorder %s179, %s180
      %p194 = scmp.eq.s32.totalorder %s30, 3
      %p195 = por %p193, %p194
      %p197 = scmp.ne.s32.totalorder %s180, %s196
      %p198 = scmp.eq.s32.totalorder %s30, 0
      %p199 = por %p197, %p198
      %s201 = sadd.s32 %s200, 1
      %p204 = scmp.eq.s32.totalorder %s24, 3
      %p205 = scmp.ne.s32.totalorder %s200, %s202
      %p206 = scmp.eq.s32.totalorder %s24, 0
      %p207 = por %p205, %p206
      %p208 = scmp.ne.s32.totalorder %s200, %s202
      %p209 = scmp.eq.s32.totalorder %s29, 3
      %p210 = por %p208, %p209
      %p211 = scmp.ne.s32.totalorder %s202, %s203
      %p212 = scmp.eq.s32.totalorder %s29, 0
      %p213 = por %p211, %p212
      %p214 = scmp.ne.s32.totalorder %s202, %s203
      %p215 = scmp.eq.s32.totalorder %s30, 3
      %p216 = por %p214, %p215
      %p218 = scmp.ne.s32.totalorder %s203, %s217
      %p219 = scmp.eq.s32.totalorder %s30, 0
      %p220 = por %p218, %p219
      %s221 = ssub.s32 %s31, %s43
      %p222 = scmp.eq.s32.totalorder %s221, 0
      %s224 = sadd.s32 %s223, 1
      %s225 = scalar_select %p222, %s223, %s224
      %p228 = pneg %p222
      %p229 = scmp.eq.s32.totalorder %s24, 3
      %p230 = por %p228, %p229
      %p231 = scmp.ne.s32.totalorder %s223, %s226
      %p232 = scmp.eq.s32.totalorder %s24, 0
      %p233 = por %p231, %p232
      %p234 = scmp.ne.s32.totalorder %s223, %s226
      %p235 = scmp.eq.s32.totalorder %s29, 3
      %p236 = por %p234, %p235
      %p237 = scmp.ne.s32.totalorder %s226, %s227
      %p238 = scmp.eq.s32.totalorder %s29, 0
      %p239 = por %p237, %p238
      %p240 = scmp.ne.s32.totalorder %s226, %s227
      %p241 = scmp.eq.s32.totalorder %s30, 3
      %p242 = por %p240, %p241
      %p244 = scmp.ne.s32.totalorder %s227, %s243
      %p245 = scmp.eq.s32.totalorder %s30, 0
      %p246 = por %p244, %p245
      %p247 = scmp.le.s32.totalorder 1, %s24
      %p248 = scmp.lt.s32.totalorder %s24, 5
      %p249 = pnand %p247, %p248
      %p250 = pneg %p249
      // Predicated region
      $region9: #{tpu_custom_call.1} parent=5 // pred_check
        _
      $region10: #{tpu_custom_call.1} parent=5 // pred_check_branch
        %252 = sbr.rel (%p249) target = $region12
      $region11: #{tpu_custom_call.1} parent=5 // pred_region
        %s253 = ssub.s32 %s24, 1
        // Predicated region
        $region13: #{tpu_custom_call.1} parent=11 // pred_check
          %p254 = pneg %p62
        $region14: #{tpu_custom_call.1} parent=11 // pred_check_branch
          %256 = sbr.rel (%p254) target = $region16
        $region15: #{tpu_custom_call.1} parent=11 // pred_region
          %s257 = smul.u32 2, %s33
          %s259 = ssub.s32 256, 256
          %260 = vsyncadd [#allocation3], %s259
          %s261 = smul.addr %s257, 128
          %s262 = scalar_lea.hbm %s0, %s261
          %s263 = sshll.u32 [#allocation2], 4
          %s264 = int_to_ptr.vmem [resolvable:$true] %s263
          %269 = dma.hbm_to_vmem [thread:$0]  %s262, 256, %s264, [#allocation3], 128, 128, 8
        $region16: #{tpu_custom_call.1} parent=11 // pred_fallthru
          _
        // Predicated region
        $region17: #{tpu_custom_call.1} parent=11 // pred_check
          %p270 = pneg %p213
        $region18: #{tpu_custom_call.1} parent=11 // pred_check_branch
          %272 = sbr.rel (%p270) target = $region20
        $region19: #{tpu_custom_call.1} parent=11 // pred_region
          %s274 = ssub.s32 32, 32
          %275 = vsyncadd [#allocation12], %s274
          %s277 = sshll.u32 [#allocation13], 4
          %s278 = int_to_ptr.vmem [resolvable:$true] %s277
          %280 = dma.hbm_to_vmem [thread:$0]  %s6, 32, %s278, [#allocation12]
        $region20: #{tpu_custom_call.1} parent=11 // pred_fallthru
          _
      $region12: #{tpu_custom_call.1} parent=5 // pred_fallthru
        _
      %p281 = scmp.lt.s32.totalorder %s24, 4
      // Predicated region
      $region21: #{tpu_custom_call.1} parent=5 // pred_check
        %p282 = pneg %p281
      $region22: #{tpu_custom_call.1} parent=5 // pred_check_branch
        %284 = sbr.rel (%p282) target = $region24
      $region23: #{tpu_custom_call.1} parent=5 // pred_region
        // Predicated region
        $region25: #{tpu_custom_call.1} parent=23 // pred_check
          %p285 = pneg %p82
        $region26: #{tpu_custom_call.1} parent=23 // pred_check_branch
          %287 = sbr.rel (%p285) target = $region28
        $region27: #{tpu_custom_call.1} parent=23 // pred_region
          %s288 = sand.u32 %s24, 1
          %s289 = scalar_lea.sflag [#allocation6], %s288
          %s290 = sand.u32 %s72, 1
          %s291 = smul.addr %s290, 4
          %s292 = scalar_lea.vmem [#allocation5], %s291
          %s294 = ssub.s32 64, 64
          %295 = vsyncadd %s289, %s294
          %s296 = smul.addr %s32, 64
          %s297 = scalar_lea.hbm %s1, %s296
          %s299 = sshll.u32 %s292, 4
          %s300 = int_to_ptr.vmem [resolvable:$true] %s299
          %302 = dma.hbm_to_vmem [thread:$0]  %s297, 64, %s300, %s289
        $region28: #{tpu_custom_call.1} parent=23 // pred_fallthru
          _
        // Predicated region
        $region29: #{tpu_custom_call.1} parent=23 // pred_check
          %p303 = pneg %p108
        $region30: #{tpu_custom_call.1} parent=23 // pred_check_branch
          %305 = sbr.rel (%p303) target = $region32
        $region31: #{tpu_custom_call.1} parent=23 // pred_region
          %s306 = sand.u32 %s24, 1
          %s307 = scalar_lea.sflag [#allocation6], %s306
          %s308 = sand.u32 %s98, 1
          %s309 = smul.addr %s308, 16
          %s310 = scalar_lea.vmem [#allocation7], %s309
          %s312 = ssub.s32 256, 256
          %313 = vsyncadd %s307, %s312
          %s314 = smul.addr %s32, 4
          %s315 = smul.addr %s314, 64
          %s316 = scalar_lea.hbm %s2, %s315
          %s317 = sshll.u32 %s310, 4
          %s318 = int_to_ptr.vmem [resolvable:$true] %s317
          %323 = dma.hbm_to_vmem [thread:$0]  %s316, 256, %s318, %s307, 64, 64, 4
        $region32: #{tpu_custom_call.1} parent=23 // pred_fallthru
          _
        // Predicated region
        $region33: #{tpu_custom_call.1} parent=23 // pred_check
          %p324 = pneg %p134
        $region34: #{tpu_custom_call.1} parent=23 // pred_check_branch
          %326 = sbr.rel (%p324) target = $region36
        $region35: #{tpu_custom_call.1} parent=23 // pred_region
          %s327 = sand.u32 %s24, 1
          %s328 = scalar_lea.sflag [#allocation9], %s327
          %s329 = sand.u32 %s124, 1
          %s330 = smul.addr %s329, 2
          %s331 = scalar_lea.vmem [#allocation8], %s330
          %s333 = ssub.s32 32, 32
          %334 = vsyncadd %s328, %s333
          %s335 = smul.addr %s32, 32
          %s336 = scalar_lea.hbm %s3, %s335
          %s338 = sshll.u32 %s331, 4
          %s339 = int_to_ptr.vmem [resolvable:$true] %s338
          %341 = dma.hbm_to_vmem [thread:$0]  %s336, 32, %s339, %s328
        $region36: #{tpu_custom_call.1} parent=23 // pred_fallthru
          _
        // Predicated region
        $region37: #{tpu_custom_call.1} parent=23 // pred_check
          %p342 = pneg %p160
        $region38: #{tpu_custom_call.1} parent=23 // pred_check_branch
          %344 = sbr.rel (%p342) target = $region40
        $region39: #{tpu_custom_call.1} parent=23 // pred_region
          %s345 = sand.u32 %s24, 1
          %s346 = scalar_lea.sflag [#allocation9], %s345
          %s347 = sand.u32 %s150, 1
          %s348 = smul.addr %s347, 24
          %s349 = scalar_lea.vmem [#allocation10], %s348
          %s351 = ssub.s32 384, 384
          %352 = vsyncadd %s346, %s351
          %s353 = smul.addr %s32, 6
          %s354 = smul.addr %s353, 64
          %s355 = scalar_lea.hbm %s4, %s354
          %s356 = sshll.u32 %s349, 4
          %s357 = int_to_ptr.vmem [resolvable:$true] %s356
          %362 = dma.hbm_to_vmem [thread:$0]  %s355, 384, %s357, %s346, 64, 64, 4
        $region40: #{tpu_custom_call.1} parent=23 // pred_fallthru
          _
        // Predicated region
        $region41: #{tpu_custom_call.1} parent=23 // pred_check
          %p363 = pneg %p186
        $region42: #{tpu_custom_call.1} parent=23 // pred_check_branch
          %365 = sbr.rel (%p363) target = $region44
        $region43: #{tpu_custom_call.1} parent=23 // pred_region
          %s366 = sand.u32 %s24, 1
          %s367 = scalar_lea.sflag [#allocation12], %s366
          %s368 = sand.u32 %s176, 1
          %s369 = smul.addr %s368, 24
          %s370 = scalar_lea.vmem [#allocation11], %s369
          %s372 = ssub.s32 384, 384
          %373 = vsyncadd %s367, %s372
          %s374 = smul.addr %s32, 6
          %s375 = smul.addr %s374, 64
          %s376 = scalar_lea.hbm %s5, %s375
          %s377 = sshll.u32 %s370, 4
          %s378 = int_to_ptr.vmem [resolvable:$true] %s377
          %383 = dma.hbm_to_vmem [thread:$0]  %s376, 384, %s378, %s367, 64, 64, 4
        $region44: #{tpu_custom_call.1} parent=23 // pred_fallthru
          _
      $region24: #{tpu_custom_call.1} parent=5 // pred_fallthru
        _
      %p384 = scmp.le.s32.totalorder 1, %s24
      %p385 = scmp.lt.s32.totalorder %s24, 5
      %p386 = pnand %p384, %p385
      %p387 = pneg %p386
      // Predicated region
      $region45: #{tpu_custom_call.1} parent=5 // pred_check
        _
      $region46: #{tpu_custom_call.1} parent=5 // pred_check_branch
        %389 = sbr.rel (%p386) target = $region48
      $region47: #{tpu_custom_call.1} parent=5 // pred_region
        %s390 = ssub.s32 %s24, 1
        // Predicated region
        $region49: #{tpu_custom_call.1} parent=47 // pred_check
          %p391 = pneg %p62
        $region50: #{tpu_custom_call.1} parent=47 // pred_check_branch
          %393 = sbr.rel (%p391) target = $region52
        $region51: #{tpu_custom_call.1} parent=47 // pred_region
          %394 = dma.done [#allocation3], 256
        $region52: #{tpu_custom_call.1} parent=47 // pred_fallthru
          _
        %s395 = sand.u32 %s29, 1
        %s396 = scalar_lea.sflag [#allocation6], %s395
        %s397 = sand.u32 %s75, 1
        %s398 = smul.addr %s397, 4
        %s399 = scalar_lea.vmem [#allocation5], %s398
        // Predicated region
        $region53: #{tpu_custom_call.1} parent=47 // pred_check
          %p400 = pneg %p88
        $region54: #{tpu_custom_call.1} parent=47 // pred_check_branch
          %402 = sbr.rel (%p400) target = $region56
        $region55: #{tpu_custom_call.1} parent=47 // pred_region
          %403 = dma.done %s396, 64
        $region56: #{tpu_custom_call.1} parent=47 // pred_fallthru
          _
        %s404 = sand.u32 %s29, 1
        %s405 = scalar_lea.sflag [#allocation6], %s404
        %s406 = sand.u32 %s101, 1
        %s407 = smul.addr %s406, 16
        %s408 = scalar_lea.vmem [#allocation7], %s407
        // Predicated region
        $region57: #{tpu_custom_call.1} parent=47 // pred_check
          %p409 = pneg %p114
        $region58: #{tpu_custom_call.1} parent=47 // pred_check_branch
          %411 = sbr.rel (%p409) target = $region60
        $region59: #{tpu_custom_call.1} parent=47 // pred_region
          %412 = dma.done %s405, 256
        $region60: #{tpu_custom_call.1} parent=47 // pred_fallthru
          _
        %s413 = sand.u32 %s29, 1
        %s414 = scalar_lea.sflag [#allocation9], %s413
        %s415 = sand.u32 %s127, 1
        %s416 = smul.addr %s415, 2
        %s417 = scalar_lea.vmem [#allocation8], %s416
        // Predicated region
        $region61: #{tpu_custom_call.1} parent=47 // pred_check
          %p418 = pneg %p140
        $region62: #{tpu_custom_call.1} parent=47 // pred_check_branch
          %420 = sbr.rel (%p418) target = $region64
        $region63: #{tpu_custom_call.1} parent=47 // pred_region
          %421 = dma.done %s414, 32
        $region64: #{tpu_custom_call.1} parent=47 // pred_fallthru
          _
        %s422 = sand.u32 %s29, 1
        %s423 = scalar_lea.sflag [#allocation9], %s422
        %s424 = sand.u32 %s153, 1
        %s425 = smul.addr %s424, 24
        %s426 = scalar_lea.vmem [#allocation10], %s425
        // Predicated region
        $region65: #{tpu_custom_call.1} parent=47 // pred_check
          %p427 = pneg %p166
        $region66: #{tpu_custom_call.1} parent=47 // pred_check_branch
          %429 = sbr.rel (%p427) target = $region68
        $region67: #{tpu_custom_call.1} parent=47 // pred_region
          %430 = dma.done %s423, 384
        $region68: #{tpu_custom_call.1} parent=47 // pred_fallthru
          _
        %s431 = sand.u32 %s29, 1
        %s432 = scalar_lea.sflag [#allocation12], %s431
        %s433 = sand.u32 %s179, 1
        %s434 = smul.addr %s433, 24
        %s435 = scalar_lea.vmem [#allocation11], %s434
        // Predicated region
        $region69: #{tpu_custom_call.1} parent=47 // pred_check
          %p436 = pneg %p192
        $region70: #{tpu_custom_call.1} parent=47 // pred_check_branch
          %438 = sbr.rel (%p436) target = $region72
        $region71: #{tpu_custom_call.1} parent=47 // pred_region
          %439 = dma.done %s432, 384
        $region72: #{tpu_custom_call.1} parent=47 // pred_fallthru
          _
        // Predicated region
        $region73: #{tpu_custom_call.1} parent=47 // pred_check
          %p440 = pneg %p213
        $region74: #{tpu_custom_call.1} parent=47 // pred_check_branch
          %442 = sbr.rel (%p440) target = $region76
        $region75: #{tpu_custom_call.1} parent=47 // pred_region
          %443 = dma.done [#allocation12], 32
        $region76: #{tpu_custom_call.1} parent=47 // pred_fallthru
          _
        %p444 = pneg %p62
        %p445 = pneg %p59
        %s446 = sand.u32 %s29, 1
        %s447 = scalar_lea.sflag [#allocation6], %s446
        %s448 = sand.u32 %s75, 1
        %s449 = smul.addr %s448, 4
        %s450 = scalar_lea.vmem [#allocation5], %s449
        %p451 = pneg %p88
        %p452 = pneg %p85
        %s453 = sand.u32 %s29, 1
        %s454 = scalar_lea.sflag [#allocation6], %s453
        %s455 = sand.u32 %s101, 1
        %s456 = smul.addr %s455, 16
        %s457 = scalar_lea.vmem [#allocation7], %s456
        %p458 = pneg %p114
        %p459 = pneg %p111
        %s460 = sand.u32 %s29, 1
        %s461 = scalar_lea.sflag [#allocation9], %s460
        %s462 = sand.u32 %s127, 1
        %s463 = smul.addr %s462, 2
        %s464 = scalar_lea.vmem [#allocation8], %s463
        %p465 = pneg %p140
        %p466 = pneg %p137
        %s467 = sand.u32 %s29, 1
        %s468 = scalar_lea.sflag [#allocation9], %s467
        %s469 = sand.u32 %s153, 1
        %s470 = smul.addr %s469, 24
        %s471 = scalar_lea.vmem [#allocation10], %s470
        %p472 = pneg %p166
        %p473 = pneg %p163
        %s474 = sand.u32 %s29, 1
        %s475 = scalar_lea.sflag [#allocation12], %s474
        %s476 = sand.u32 %s179, 1
        %s477 = smul.addr %s476, 24
        %s478 = scalar_lea.vmem [#allocation11], %s477
        %p479 = pneg %p192
        %p480 = pneg %p189
        %p481 = pneg %p213
        %p482 = pneg %p210
        %p483 = pneg %p239
        %p484 = pneg %p236
        %s485 = smul.u32 2, %s33
        %s486 = smul.u32 2, %s33
        %p488 = scmp.eq.s32.totalorder %s34, 0
        // Predicated region
        $region77: #{tpu_custom_call.1} parent=47 // pred_check
          %p489 = pneg %p488
        $region78: #{tpu_custom_call.1} parent=47 // pred_check_branch
          %491 = sbr.rel (%p489) target = $region80
        $region79: #{tpu_custom_call.1} parent=47 // pred_region
          %v492 = vld [vmem:[#allocation2] sm:$0xff]
          %v493 = vld [vmem:[#allocation2 + $0x8] sm:$0xff]
          %vm494 = vcmask 261120
          %495 = vst.msk [vmem:[#allocation14] sm:$0xff] %vm494, %v492
          %496 = vst.msk [vmem:[#allocation14 + $0x8] sm:$0xff] %vm494, %v493
        $region80: #{tpu_custom_call.1} parent=47 // pred_fallthru
          _
        %v497 = vld [vmem:[#allocation14] sm:$0xff]
        %v498 = vld [vmem:[#allocation14 + $0x8] sm:$0xff]
        %v499 = vld [vmem:[%s399] sm:$0xf]
        %vm500 = vcmask 261120
        %v501 = vsel %vm500, %v497, 0.0
        %502 = vadd.xlane.f32.xlu0 %v501
        %v503 = vpop.xlane.xlu0 %502
        %v504 = vsel %vm500, %v498, 0.0
        %505 = vadd.xlane.f32.xlu0 %v504
        %v506 = vpop.xlane.xlu0 %505
        %v507 = vrcp.pop 32.0
        %v508 = vmul.f32 %v503, %v507
        %v509 = vmul.f32 %v506, %v507
        %v510 = vsub.f32 %v497, %v508
        %v511 = vsub.f32 %v498, %v509
        %v512 = vmul.f32 %v510, %v510
        %v513 = vmul.f32 %v511, %v511
        %v514 = vsel %vm500, %v512, 0.0
        %515 = vadd.xlane.f32.xlu0 %v514
        %v516 = vpop.xlane.xlu0 %515
        %v517 = vsel %vm500, %v513, 0.0
        %518 = vadd.xlane.f32.xlu0 %v517
        %v519 = vpop.xlane.xlu0 %518
        %v520 = vmul.f32 %v516, %v507
        %v521 = vmul.f32 %v519, %v507
        %v522 = vadd.f32 %v520, 1e-05
        %v523 = vadd.f32 %v521, 1e-05
        %v524 = vrsqrt.pop %v522
        %v525 = vrsqrt.pop %v523
        %v526 = vmul.f32 %v510, %v524
        %v527 = vmul.f32 %v511, %v525
        %v528 = vlaneseq
        %v529 = vshrl.u32 %v528, 7
        %v530 = vsub.s32 0, %v529
        %v531 = vrot.slane %v499, %v530
        %v532 = vmul.f32 %v526, %v531
        %v533 = vmul.f32 %v527, %v531
        %v534 = vlaneseq
        %v535 = vshrl.u32 %v534, 7
        %v536 = vsub.s32 1, %v535
        %v537 = vrot.slane %v499, %v536
        %v538 = vadd.f32 %v532, %v537
        %v539 = vadd.f32 %v533, %v537
        %v540 = vpack.c.bf16 %v539, %v538
        %v541 = vld [vmem:[%s408] sm:$0xf]
        %v542 = vld [vmem:[%s408 + $0x4] sm:$0xf]
        %v543 = vld [vmem:[%s408 + $0x8] sm:$0xf]
        %v544 = vld [vmem:[%s408 + $0xc] sm:$0xf]
        %v549 = vunpack.c.l.b16 %v541
        %v550 = vunpack.c.l.b16 %v542
        %v551 = vunpack.c.l.b16 %v543
        %v552 = vunpack.c.l.b16 %v544
        %v553 = vpack.c.b16 %v550, %v549
        %v554 = vpack.c.b16 %v552, %v551
        %v558 = vsel %vm500, %v540, 0
        %560 = vmatprep.subr.bf16.mxu0 0
        %561 = vmatpush1.bf16.msra.mxu0 %v553
        %562 = vmatprep.subr.bf16.mxu0 0
        %563 = vmatpush1.bf16.msra.mxu0 %v554
        %564 = vmatprep.subr.bf16.mxu0 0
        %565 = vmatpush1.bf16.msra.mxu0 0
        %566 = vmatprep.subr.bf16.mxu0 0
        %567 = vmatpush1.bf16.msra.mxu0 0
        %568 = vmatprep.subr.bf16.mxu0 0
        %569 = vmatpush1.bf16.msra.mxu0 0
        %570 = vmatprep.subr.bf16.mxu0 0
        %571 = vmatpush1.bf16.msra.mxu0 0
        %572 = vmatprep.subr.bf16.mxu0 0
        %573 = vmatpush1.bf16.msra.mxu0 0
        %574 = vmatprep.subr.bf16.mxu0 0
        %575 = vmatpush1.bf16.msra.mxu0 0
        %576 = vmatprep.subr.bf16.mxu0 0
        %577 = vmatpush1.bf16.msra.mxu0 0
        %578 = vmatprep.subr.bf16.mxu0 0
        %579 = vmatpush1.bf16.msra.mxu0 0
        %580 = vmatprep.subr.bf16.mxu0 0
        %581 = vmatpush1.bf16.msra.mxu0 0
        %582 = vmatprep.subr.bf16.mxu0 0
        %583 = vmatpush1.bf16.msra.mxu0 0
        %584 = vmatprep.subr.bf16.mxu0 0
        %585 = vmatpush1.bf16.msra.mxu0 0
        %586 = vmatprep.subr.bf16.mxu0 0
        %587 = vmatpush1.bf16.msra.mxu0 0
        %588 = vmatprep.subr.bf16.mxu0 0
        %589 = vmatpush1.bf16.msra.mxu0 0
        %590 = vmatprep.subr.bf16.mxu0 0
        %591 = vmatpush1.bf16.msra.mxu0 0
        %592 = vmatprep.mubr.bf16.mxu0 0
        %593 = vmatmul.mubr.bf16.gmra.mrb[0].mxu0 %v558
        %v594 = vpop.f32.mrb[0].mxu0
        %v595 = vadd.f32 0.0, %v594
        %v596 = vpop.f32.mrb[0].mxu0
        %v597 = vpop.f32.mrb[0].mxu0
        %v598 = vadd.f32 0.0, %v597
        %v599 = vpop.f32.mrb[0].mxu0
        %600 = vdwg.mxu0
        %v601 = vxor.u32 %v595, 2147483648
        %v602 = vxor.u32 %v598, 2147483648
        %v603 = vmul.f32 %v601, 1.442695
        %v604 = vpow.pop %v603
        %v605 = vmul.f32 %v602, 1.442695
        %v606 = vpow.pop %v605
        %v607 = vadd.f32 %v604, 1.0
        %v608 = vadd.f32 %v606, 1.0
        %v609 = vrcp.pop %v607
        %v610 = vmul.f32 1.0, %v609
        %v611 = vrcp.pop %v608
        %v612 = vmul.f32 1.0, %v611
        %v613 = vlaneseq
        %v614 = vshrl.u32 %v613, 7
        %v615 = vadd.s32 %v614, 8
        %vm616 = vcmp.lt.s32.totalorder %v614, 0
        %v617 = vsub.s32 0, %v614
        %v618 = vsel %vm616, %v617, %v614
        %v619 = vshrl.u32 %v618, 3
        %v620 = vand.u32 %v618, 7
        %v621 = vsub.s32 0, %v620
        %v622 = vsel %vm616, %v621, %v620
        %vm623 = vcmp.lt.s32.totalorder %v615, 0
        %v624 = vsub.s32 0, %v615
        %v625 = vsel %vm623, %v624, %v615
        %v626 = vshrl.u32 %v625, 3
        %v627 = vand.u32 %v625, 7
        %v628 = vsub.s32 0, %v627
        %v629 = vsel %vm623, %v628, %v627
        %vm630 = vcmp.ne.s32.totalorder %v622, 0
        %vm631 = vcmp.ne.s32.totalorder %v629, 0
        %vm632 = vcmp.lt.s32.totalorder %v622, 0
        %vm633 = vcmp.lt.s32.totalorder %v629, 0
        %vm634 = vmand %vm632, %vm630
        %vm635 = vmand %vm633, %vm631
        %v636 = vadd.s32 %v622, 8
        %v637 = vadd.s32 %v629, 8
        %v638 = vsel %vm634, %v636, %v622
        %v639 = vsel %vm635, %v637, %v629
        %vm640 = vcmp.ne.s32.totalorder %v638, 0
        %vm641 = vcmp.ne.s32.totalorder %v639, 0
        %v642 = vsel %vm640, 1, 0
        %v643 = vsel %vm641, 1, 0
        %v644 = vcvt.s32.f32 %v642
        %v645 = vcvt.s32.f32 %v643
        %vm646 = vcmp.ne.s32.totalorder %v638, 7
        %vm647 = vcmp.ne.s32.totalorder %v639, 7
        %v648 = vsel %vm646, 1, 0
        %v649 = vsel %vm647, 1, 0
        %v650 = vcvt.s32.f32 %v648
        %v651 = vcvt.s32.f32 %v649
        %v652 = vld [vmem:[%s417] sm:$0x3]
        %v653 = vunpack.c.l.bf16 %v652
        %v654 = vrot.slane %v595, 7
        %v655 = vrot.slane %v598, 7
        %vm656 = vcmp.lt.s32.totalorder %v614, 1
        %v657 = vsel %vm656, %v654, %v655
        %v658 = vsel %vm656, %v655, %v654
        %v659 = vmul.f32 %v658, %v644
        %v660 = vmul.f32 %v657, %v645
        %v661 = vlaneseq
        %v662 = vshrl.u32 %v661, 7
        %v663 = vsub.s32 0, %v662
        %v664 = vrot.slane %v653, %v663
        %v665 = vmul.f32 %v659, %v664
        %v666 = vmul.f32 %v660, %v664
        %v667 = vlaneseq
        %v668 = vshrl.u32 %v667, 7
        %v669 = vsub.s32 1, %v668
        %v670 = vrot.slane %v653, %v669
        %v671 = vmul.f32 %v595, %v670
        %v672 = vmul.f32 %v598, %v670
        %v673 = vadd.f32 %v665, %v671
        %v674 = vadd.f32 %v666, %v672
        %v675 = vrot.slane %v595, 1
        %v676 = vrot.slane %v598, 1
        %vm677 = vcmp.lt.s32.totalorder %v614, 7
        %v678 = vsel %vm677, %v675, %v676
        %v679 = vsel %vm677, %v676, %v675
        %v680 = vmul.f32 %v678, %v650
        %v681 = vmul.f32 %v679, %v651
        %v682 = vlaneseq
        %v683 = vshrl.u32 %v682, 7
        %v684 = vsub.s32 2, %v683
        %v685 = vrot.slane %v653, %v684
        %v686 = vmul.f32 %v680, %v685
        %v687 = vmul.f32 %v681, %v685
        %v688 = vadd.f32 %v673, %v686
        %v689 = vadd.f32 %v674, %v687
        %v690 = vxor.u32 %v688, 2147483648
        %v691 = vxor.u32 %v689, 2147483648
        %v692 = vmul.f32 %v690, 1.442695
        %v693 = vpow.pop %v692
        %v694 = vmul.f32 %v691, 1.442695
        %v695 = vpow.pop %v694
        %v696 = vadd.f32 %v693, 1.0
        %v697 = vadd.f32 %v695, 1.0
        %v698 = vrcp.pop %v696
        %v699 = vmul.f32 1.0, %v698
        %v700 = vrcp.pop %v697
        %v701 = vmul.f32 1.0, %v700
        %v702 = vmul.f32 %v688, %v699
        %v703 = vmul.f32 %v689, %v701
        %v704 = vpack.c.bf16 %v703, %v702
        %v705 = vld [vmem:[%s426] sm:$0xf]
        %v706 = vld [vmem:[%s426 + $0x4] sm:$0xf]
        %v707 = vld [vmem:[%s426 + $0x8] sm:$0xf]
        %v708 = vld [vmem:[%s426 + $0xc] sm:$0xf]
        %v709 = vld [vmem:[%s426 + $0x10] sm:$0xf]
        %v710 = vld [vmem:[%s426 + $0x14] sm:$0xf]
        %v711 = vlaneseq
        %v712 = vshrl.u32 %v711, 7
        %v713 = vsub.s32 2, %v712
        %v714 = vrot.slane %v499, %v713
        %v721 = vunpack.c.l.b16 %v705
        %v722 = vunpack.c.l.b16 %v706
        %v723 = vunpack.c.l.b16 %v707
        %v724 = vunpack.c.l.b16 %v708
        %v725 = vunpack.c.l.b16 %v709
        %v726 = vunpack.c.l.b16 %v710
        %v727 = vpack.c.b16 %v722, %v721
        %v728 = vpack.c.b16 %v724, %v723
        %v729 = vpack.c.b16 %v726, %v725
        %vm733 = vcmask 392192
        %v735 = vsel %vm733, %v704, 0
        %737 = vmatprep.subr.bf16.mxu0 0
        %738 = vmatpush1.bf16.msra.mxu0 %v727
        %739 = vmatprep.subr.bf16.mxu0 0
        %740 = vmatpush1.bf16.msra.mxu0 %v728
        %741 = vmatprep.subr.bf16.mxu0 0
        %742 = vmatpush1.bf16.msra.mxu0 %v729
        %743 = vmatprep.subr.bf16.mxu0 0
        %744 = vmatpush1.bf16.msra.mxu0 0
        %745 = vmatprep.subr.bf16.mxu0 0
        %746 = vmatpush1.bf16.msra.mxu0 0
        %747 = vmatprep.subr.bf16.mxu0 0
        %748 = vmatpush1.bf16.msra.mxu0 0
        %749 = vmatprep.subr.bf16.mxu0 0
        %750 = vmatpush1.bf16.msra.mxu0 0
        %751 = vmatprep.subr.bf16.mxu0 0
        %752 = vmatpush1.bf16.msra.mxu0 0
        %753 = vmatprep.subr.bf16.mxu0 0
        %754 = vmatpush1.bf16.msra.mxu0 0
        %755 = vmatprep.subr.bf16.mxu0 0
        %756 = vmatpush1.bf16.msra.mxu0 0
        %757 = vmatprep.subr.bf16.mxu0 0
        %758 = vmatpush1.bf16.msra.mxu0 0
        %759 = vmatprep.subr.bf16.mxu0 0
        %760 = vmatpush1.bf16.msra.mxu0 0
        %761 = vmatprep.subr.bf16.mxu0 0
        %762 = vmatpush1.bf16.msra.mxu0 0
        %763 = vmatprep.subr.bf16.mxu0 0
        %764 = vmatpush1.bf16.msra.mxu0 0
        %765 = vmatprep.subr.bf16.mxu0 0
        %766 = vmatpush1.bf16.msra.mxu0 0
        %767 = vmatprep.subr.bf16.mxu0 0
        %768 = vmatpush1.bf16.msra.mxu0 0
        %769 = vmatprep.mubr.bf16.mxu0 0
        %770 = vmatmul.mubr.bf16.gmra.mrb[0].mxu0 %v735
        %v771 = vpop.f32.mrb[0].mxu0
        %v772 = vadd.f32 %v714, %v771
        %v773 = vpop.f32.mrb[0].mxu0
        %v774 = vpop.f32.mrb[0].mxu0
        %v775 = vadd.f32 %v714, %v774
        %v776 = vpop.f32.mrb[0].mxu0
        %777 = vdwg.mxu0
        %v778 = vand.u32 2147483647, %v772
        %v779 = vand.u32 2147483647, %v775
        %v780 = vsub.f32 0.0, %v778
        %v781 = vsub.f32 0.0, %v779
        %v782 = vmul.f32 %v780, 1.442695
        %v783 = vpow.pop %v782
        %v784 = vmul.f32 %v781, 1.442695
        %v785 = vpow.pop %v784
        %vm786 = vcmp.ge.f32.partialorder %v772, 0.0
        %vm787 = vcmp.ge.f32.partialorder %v775, 0.0
        %v788 = vmul.f32 %v783, 2.0
        %v789 = vmul.f32 %v785, 2.0
        %v790 = vadd.f32 %v788, 1.0
        %v791 = vadd.f32 %v789, 1.0
        %v792 = vadd.f32 %v783, 2.0
        %v793 = vadd.f32 %v785, 2.0
        %v794 = vsel %vm786, %v790, %v792
        %v795 = vsel %vm787, %v791, %v793
        %v796 = vadd.f32 %v783, 1.0
        %v797 = vadd.f32 %v785, 1.0
        %v798 = vrcp.pop %v794
        %v799 = vrcp.pop %v795
        %v800 = vmul.f32 %v796, %v798
        %v801 = vmul.f32 %v797, %v799
        %v802 = vmul.f32 %v702, %v800
        %v803 = vmul.f32 %v703, %v801
        %806 = vrot.lane.b32.xlu0 %v610, 80
        %v807 = vpop.permute.xlu0 %806
        %808 = vrot.lane.b32.xlu0 %v612, 80
        %v809 = vpop.permute.xlu0 %808
        %v812 = vmul.f32 %v802, %v807
        %v813 = vmul.f32 %v803, %v809
        %v814 = vpack.c.bf16 %v813, %v812
        %v815 = vld [vmem:[%s435] sm:$0xf]
        %v816 = vld [vmem:[%s435 + $0x4] sm:$0xf]
        %v817 = vld [vmem:[%s435 + $0x8] sm:$0xf]
        %v818 = vld [vmem:[%s435 + $0xc] sm:$0xf]
        %v819 = vld [vmem:[%s435 + $0x10] sm:$0xf]
        %v820 = vld [vmem:[%s435 + $0x14] sm:$0xf]
        %v827 = vunpack.c.l.b16 %v815
        %v828 = vunpack.c.l.b16 %v816
        %v829 = vunpack.c.l.b16 %v817
        %v830 = vunpack.c.l.b16 %v818
        %v831 = vunpack.c.l.b16 %v819
        %v832 = vunpack.c.l.b16 %v820
        %v833 = vpack.c.b16 %v828, %v827
        %v834 = vpack.c.b16 %v830, %v829
        %v835 = vpack.c.b16 %v832, %v831
        %v840 = vsel %vm733, %v814, 0
        %842 = vmatprep.subr.bf16.mxu0 0
        %843 = vmatpush1.bf16.msra.mxu0 %v833
        %844 = vmatprep.subr.bf16.mxu0 0
        %845 = vmatpush1.bf16.msra.mxu0 %v834
        %846 = vmatprep.subr.bf16.mxu0 0
        %847 = vmatpush1.bf16.msra.mxu0 %v835
        %848 = vmatprep.subr.bf16.mxu0 0
        %849 = vmatpush1.bf16.msra.mxu0 0
        %850 = vmatprep.subr.bf16.mxu0 0
        %851 = vmatpush1.bf16.msra.mxu0 0
        %852 = vmatprep.subr.bf16.mxu0 0
        %853 = vmatpush1.bf16.msra.mxu0 0
        %854 = vmatprep.subr.bf16.mxu0 0
        %855 = vmatpush1.bf16.msra.mxu0 0
        %856 = vmatprep.subr.bf16.mxu0 0
        %857 = vmatpush1.bf16.msra.mxu0 0
        %858 = vmatprep.subr.bf16.mxu0 0
        %859 = vmatpush1.bf16.msra.mxu0 0
        %860 = vmatprep.subr.bf16.mxu0 0
        %861 = vmatpush1.bf16.msra.mxu0 0
        %862 = vmatprep.subr.bf16.mxu0 0
        %863 = vmatpush1.bf16.msra.mxu0 0
        %864 = vmatprep.subr.bf16.mxu0 0
        %865 = vmatpush1.bf16.msra.mxu0 0
        %866 = vmatprep.subr.bf16.mxu0 0
        %867 = vmatpush1.bf16.msra.mxu0 0
        %868 = vmatprep.subr.bf16.mxu0 0
        %869 = vmatpush1.bf16.msra.mxu0 0
        %870 = vmatprep.subr.bf16.mxu0 0
        %871 = vmatpush1.bf16.msra.mxu0 0
        %872 = vmatprep.subr.bf16.mxu0 0
        %873 = vmatpush1.bf16.msra.mxu0 0
        %874 = vmatprep.mubr.bf16.mxu0 0
        %875 = vmatmul.mubr.bf16.gmra.mrb[0].mxu0 %v840
        %v876 = vpop.f32.mrb[0].mxu0
        %v877 = vadd.f32 0.0, %v876
        %v878 = vpop.f32.mrb[0].mxu0
        %v879 = vpop.f32.mrb[0].mxu0
        %v880 = vadd.f32 0.0, %v879
        %v881 = vpop.f32.mrb[0].mxu0
        %882 = vdwg.mxu0
        %v883 = vlaneseq
        %v884 = vshrl.u32 %v883, 7
        %v885 = vsub.s32 3, %v884
        %v886 = vrot.slane %v499, %v885
        %v887 = vmul.f32 %v877, %v886
        %v888 = vmul.f32 %v880, %v886
        %v889 = vadd.f32 %v887, %v497
        %v890 = vadd.f32 %v888, %v498
        %891 = vst.msk [vmem:[#allocation14] sm:$0xff] %vm500, %v889
        %892 = vst.msk [vmem:[#allocation14 + $0x8] sm:$0xff] %vm500, %v890
        %p893 = scmp.eq.s32.totalorder %s34, 3
        // Predicated region
        $region81: #{tpu_custom_call.1} parent=47 // pred_check
          %p894 = pneg %p893
        $region82: #{tpu_custom_call.1} parent=47 // pred_check_branch
          %896 = sbr.rel (%p894) target = $region84
        $region83: #{tpu_custom_call.1} parent=47 // pred_region
          %v897 = vld [vmem:[#allocation13] sm:$0x1]
          %v898 = vld [vmem:[#allocation13 + $0x1] sm:$0x1]
          %v899 = vsel %vm500, %v889, 0.0
          %900 = vadd.xlane.f32.xlu0 %v899
          %v901 = vpop.xlane.xlu0 %900
          %v902 = vsel %vm500, %v890, 0.0
          %903 = vadd.xlane.f32.xlu0 %v902
          %v904 = vpop.xlane.xlu0 %903
          %v905 = vmul.f32 %v901, %v507
          %v906 = vmul.f32 %v904, %v507
          %v907 = vsub.f32 %v889, %v905
          %v908 = vsub.f32 %v890, %v906
          %v909 = vmul.f32 %v907, %v907
          %v910 = vmul.f32 %v908, %v908
          %v911 = vsel %vm500, %v909, 0.0
          %912 = vadd.xlane.f32.xlu0 %v911
          %v913 = vpop.xlane.xlu0 %912
          %v914 = vsel %vm500, %v910, 0.0
          %915 = vadd.xlane.f32.xlu0 %v914
          %v916 = vpop.xlane.xlu0 %915
          %v917 = vmul.f32 %v913, %v507
          %v918 = vmul.f32 %v916, %v507
          %v919 = vadd.f32 %v917, 1e-05
          %v920 = vadd.f32 %v918, 1e-05
          %v921 = vrsqrt.pop %v919
          %v922 = vrsqrt.pop %v920
          %v923 = vmul.f32 %v907, %v921
          %v924 = vmul.f32 %v908, %v922
          %v925 = vlaneseq
          %v926 = vshrl.u32 %v925, 7
          %v927 = vsub.s32 0, %v926
          %v928 = vrot.slane %v897, %v927
          %v929 = vmul.f32 %v923, %v928
          %v930 = vmul.f32 %v924, %v928
          %v931 = vlaneseq
          %v932 = vshrl.u32 %v931, 7
          %v933 = vsub.s32 0, %v932
          %v934 = vrot.slane %v898, %v933
          %v935 = vadd.f32 %v929, %v934
          %v936 = vadd.f32 %v930, %v934
          %937 = vst.msk [vmem:[#allocation14] sm:$0xff] %vm500, %v935
          %938 = vst.msk [vmem:[#allocation14 + $0x8] sm:$0xff] %vm500, %v936
        $region84: #{tpu_custom_call.1} parent=47 // pred_fallthru
          _
        // Predicated region
        $region85: #{tpu_custom_call.1} parent=47 // pred_check
          %p939 = pneg %p236
        $region86: #{tpu_custom_call.1} parent=47 // pred_check_branch
          %941 = sbr.rel (%p939) target = $region88
        $region87: #{tpu_custom_call.1} parent=47 // pred_region
          %s942 = smul.u32 2, %s33
          %s944 = ssub.s32 256, 256
          %945 = vsyncadd [#allocation4], %s944
          %s946 = smul.addr %s942, 128
          %s947 = scalar_lea.hbm %s7, %s946
          %s948 = sshll.u32 [#allocation14], 4
          %s949 = int_to_ptr.vmem [resolvable:$true] %s948
          %954 = dma.vmem_to_hbm [thread:$0]  %s949, 256, %s947, [#allocation4], 128, 128, 8
        $region88: #{tpu_custom_call.1} parent=47 // pred_fallthru
          _
        // Predicated region
        $region89: #{tpu_custom_call.1} parent=47 // pred_check
          %p955 = pneg %p236
        $region90: #{tpu_custom_call.1} parent=47 // pred_check_branch
          %957 = sbr.rel (%p955) target = $region92
        $region91: #{tpu_custom_call.1} parent=47 // pred_region
          %958 = dma.done [#allocation4], 256
        $region92: #{tpu_custom_call.1} parent=47 // pred_fallthru
          _
      $region48: #{tpu_custom_call.1} parent=5 // pred_fallthru
        _
      %p959 = scmp.le.s32.totalorder 2, %s24
      // Predicated region
      $region93: #{tpu_custom_call.1} parent=5 // pred_check
        %p960 = pneg %p959
      $region94: #{tpu_custom_call.1} parent=5 // pred_check_branch
        %962 = sbr.rel (%p960) target = $region96
      $region95: #{tpu_custom_call.1} parent=5 // pred_region
        %s963 = ssub.s32 %s24, 2
      $region96: #{tpu_custom_call.1} parent=5 // pred_fallthru
        _
    $region6: #{tpu_custom_call.1} parent=1 // loop_footer
      %s28 = sadd.s32 1, %s24
    $region7: #{tpu_custom_call.1} parent=1 // loop_footer_branch
      %23 = sbr.rel target = $region3
    $region8: #{tpu_custom_call.1} parent=1 // loop_exit
      _
    %964 = vsyncpa [#allocation3], 1
    %s965 = scalar_lea.sflag [#allocation3], 1
    %966 = vsyncpa %s965, 1
    %967 = vsyncpa [#allocation6], 1
    %s968 = scalar_lea.sflag [#allocation6], 1
    %969 = vsyncpa %s968, 1
    %970 = vsyncpa [#allocation9], 1
    %s971 = scalar_lea.sflag [#allocation9], 1
    %972 = vsyncpa %s971, 1
    %973 = vsyncpa [#allocation12], 1
    %s974 = scalar_lea.sflag [#allocation12], 1
    %975 = vsyncpa %s974, 1
    %976 = vsyncpa [#allocation4], 1
    %s977 = scalar_lea.sflag [#allocation4], 1
    %978 = vsyncpa %s977, 1

</llo_original>
